<compile_context>
chip_gen: v7x
topology: tpu7x:2x2x1
jax: 0.10.0
libtpu: 0.0.40
codegen_flags: <defaults>
</compile_context>

<pallas_src>
import jax
import jax.numpy as jnp
from jax.experimental import pallas as pl
from jax.experimental.pallas import tpu as pltpu


def _round_up(x, m):
    return (x + m - 1) // m * m


# ----------------------------- Pallas kernel --------------------------------
def fused_gcn_kernel(a_ref, x_ref, w_ref, b_ref, o_ref, h_ref, xw_ref):
    """grid = (num_layers, num_row_tiles); layer axis outermost (sequential)."""
    layer = pl.program_id(0)
    rtile = pl.program_id(1)
    tm = o_ref.shape[0]        # static row-tile size
    n_pad = h_ref.shape[0]     # static padded node count

    # Load the input node features into the resident hidden-state scratch once.
    @pl.when((layer == 0) & (rtile == 0))
    def _():
        h_ref[...] = x_ref[...].astype(jnp.float32)

    # Once per layer (first row tile): XW = H @ W_l for ALL nodes, kept
    # resident in VMEM and reused by every A row tile of this layer.
    @pl.when(rtile == 0)
    def _():
        xw_ref[...] = jnp.dot(
            h_ref[...].astype(jnp.bfloat16), w_ref[0],
            preferred_element_type=jnp.float32,
        ).astype(jnp.bfloat16)

    # Row tile of the aggregation: A_norm[rows, :] @ XW on the MXU (f32 acc),
    # bias add in f32 on the VPU.
    agg = jnp.dot(a_ref[...], xw_ref[...],
                  preferred_element_type=jnp.float32) + b_ref[0]

    # Update the resident hidden state in place (the old H was only needed for
    # the XW compute at rtile == 0, which already happened this layer).
    if tm == n_pad:  # single row tile: static full-ref store
        h_ref[...] = agg
    else:
        row0 = pl.multiple_of(rtile * tm, tm)
        h_ref[pl.ds(row0, tm), :] = agg

    # Stream the current rows out; only the last layer's writeback survives.
    o_ref[...] = agg.astype(o_ref.dtype)


def fused_gcn(a_norm, x, w_stack, b_stack, *, tm):
    """a_norm: [Np, Np] bf16, x: [Np, Fp] bf16, w_stack: [L, Fp, Fp] bf16,
    b_stack: [L, 1, Fp] f32.  Returns [Np, Fp] f32 (last layer's output)."""
    n_pad = a_norm.shape[0]
    f_pad = x.shape[1]
    num_layers = w_stack.shape[0]
    n_row_tiles = n_pad // tm

    # Scoped-VMEM budget per generation (v5e/v6e: 128 MiB physical, v7x: 64 MiB).
    try:
        vmem_cap = pltpu.get_tpu_info().vmem_capacity_bytes
    except Exception:
        vmem_cap = 64 * 1024 * 1024
    vmem_limit = int(vmem_cap * 3 // 4)

    flops = num_layers * (2 * n_pad * f_pad * f_pad + 2 * n_pad * n_pad * f_pad)
    bytes_accessed = (num_layers * a_norm.size * 2 + x.size * 2
                      + w_stack.size * 2 + b_stack.size * 4
                      + num_layers * n_pad * f_pad * 4)

    return pl.pallas_call(
        fused_gcn_kernel,
        out_shape=jax.ShapeDtypeStruct((n_pad, f_pad), jnp.float32),
        grid_spec=pltpu.PrefetchScalarGridSpec(
            num_scalar_prefetch=0,
            grid=(num_layers, n_row_tiles),
            in_specs=[
                # A_norm row tiles, streamed (re-streamed once per layer).
                pl.BlockSpec((tm, n_pad), lambda l, r: (r, 0)),
                # Input features: constant block index -> DMAed once, resident.
                pl.BlockSpec((n_pad, f_pad), lambda l, r: (0, 0)),
                # Per-layer weight / bias: new block only when the layer changes.
                pl.BlockSpec((1, f_pad, f_pad), lambda l, r: (l, 0, 0)),
                pl.BlockSpec((1, 1, f_pad), lambda l, r: (l, 0, 0)),
            ],
            out_specs=pl.BlockSpec((tm, f_pad), lambda l, r: (r, 0)),
            scratch_shapes=[
                pltpu.VMEM((n_pad, f_pad), jnp.float32),   # running H (f32)
                pltpu.VMEM((n_pad, f_pad), jnp.bfloat16),  # per-layer XW
            ],
        ),
        compiler_params=pltpu.CompilerParams(
            # Layer axis is sequential; row tiles share the per-layer XW scratch
            # (computed at r == 0) and the H carry, so both stay "arbitrary".
            # TODO(synk): a two-pass variant (XW pass, then A pass) would let the
            # row axis be "parallel" to use v7x's two TensorCores.
            dimension_semantics=("arbitrary", "arbitrary"),
            vmem_limit_bytes=vmem_limit,
        ),
        cost_estimate=pl.CostEstimate(
            flops=flops, transcendentals=0, bytes_accessed=bytes_accessed),
    )(a_norm, x, w_stack, b_stack)


# ------------------------------- glue (JAX) ----------------------------------
def build_norm_adj(edge_index, num_nodes):
    """Dense symmetric-normalized adjacency with self-loops (GCN norm)."""
    src = edge_index[0]
    dst = edge_index[1]
    a = jnp.zeros((num_nodes, num_nodes), jnp.float32)
    # scatter-ADD like PyG's gcn_norm (duplicate edges accumulate weight);
    # message flows src -> dst: row = destination, col = source.
    a = a.at[dst, src].add(1.0)
    a = a + jnp.eye(num_nodes, dtype=jnp.float32)  # self loops
    deg = jnp.sum(a, axis=1)
    d_inv_sqrt = jnp.where(deg > 0, 1.0 / jnp.sqrt(deg), 0.0)
    return d_inv_sqrt[:, None] * a * d_inv_sqrt[None, :]


def init_params(key, in_features, hidden_features, num_layers, out_features=3):
    """Deterministic Glorot-style init matching GCNConv parameter shapes."""
    assert num_layers > 1, "Number of layers should be greater than 1"
    dims = [in_features] + [hidden_features] * (num_layers - 1) + [out_features]
    params = []
    for i in range(num_layers):
        key, wk = jax.random.split(key)
        f_in, f_out = dims[i], dims[i + 1]
        scale = jnp.sqrt(6.0 / (f_in + f_out))
        w = jax.random.uniform(wk, (f_in, f_out), jnp.float32, -scale, scale)
        b = jnp.zeros((1, f_out), jnp.float32)
        params.append((w, b))
    return params


def nlayer_gcn_forward(x, edge_list, params):
    """Forward pass of NLayerGCN.  x: [1, N, F_in]; edge_list: [2, E] int32."""
    x = jnp.squeeze(x, axis=0)  # only the leading singleton (safe for N==1/F==1)
    n, f_in = x.shape
    num_layers = len(params)
    out_f = params[-1][0].shape[1]

    a_norm = build_norm_adj(edge_list, n)

    # Pad: feature dims to 128 lanes, node count to the row-tile size.
    f_pad = _round_up(max([f_in] + [w.shape[1] for w, _ in params]), 128)
    n_pad = _round_up(n, 128)
    if n_pad > 512:
        tm = 512
        n_pad = _round_up(n, tm)
    else:
        tm = n_pad

    a_pad = jnp.zeros((n_pad, n_pad), jnp.bfloat16)
    a_pad = a_pad.at[:n, :n].set(a_norm.astype(jnp.bfloat16))
    x_pad = jnp.zeros((n_pad, f_pad), jnp.bfloat16)
    x_pad = x_pad.at[:n, :f_in].set(x.astype(jnp.bfloat16))

    w_stack = jnp.zeros((num_layers, f_pad, f_pad), jnp.bfloat16)
    b_stack = jnp.zeros((num_layers, 1, f_pad), jnp.float32)
    for i, (w, b) in enumerate(params):
        w_stack = w_stack.at[i, :w.shape[0], :w.shape[1]].set(w.astype(jnp.bfloat16))
        b_stack = b_stack.at[i, :, :b.shape[1]].set(b.astype(jnp.float32))

    out = fused_gcn(a_pad, x_pad, w_stack, b_stack, tm=tm)
    return out[:n, :out_f]


# --------------------------------- main --------------------------------------
if __name__ == "__main__":
    key = jax.random.PRNGKey(0)

    N = 16            # number of graph nodes
    IN_F = 8          # in_features
    HID_F = 32        # hidden_features
    N_LAYERS = 3      # num_layers
    OUT_F = 3         # out_features

    key, kx = jax.random.split(key)
    # node features, with a leading singleton dim that forward() squeezes away
    x = jax.random.normal(kx, (1, N, IN_F), dtype=jnp.float32)

    # deterministic undirected edge list (2, E)
    src = jnp.arange(N, dtype=jnp.int32)
    dst = (src + 1) % N
    extra_src = jnp.array([0, 3, 5, 7], dtype=jnp.int32)
    extra_dst = jnp.array([8, 11, 13, 2], dtype=jnp.int32)
    e_src = jnp.concatenate([src, dst, extra_src, extra_dst])
    e_dst = jnp.concatenate([dst, src, extra_dst, extra_src])
    edge_list = jnp.stack([e_src, e_dst], axis=0)  # [2, 40], symmetric

    params = init_params(key, IN_F, HID_F, N_LAYERS, OUT_F)

    out = nlayer_gcn_forward(x, edge_list, params)
    out = jax.block_until_ready(out)
    assert out.shape == (N, OUT_F), out.shape

    # Pure-JAX f32 reference (bf16 MXU inputs in the kernel -> loose tolerance).
    h = jnp.squeeze(x, axis=0)
    a_dense = build_norm_adj(edge_list, N)
    for w, b in params:
        h = a_dense @ (h @ w) + b
    assert jnp.allclose(out, h, atol=5e-2, rtol=5e-2), float(jnp.max(jnp.abs(out - h)))

    print("KERNEL_OK")
</pallas_src>

<mosaic_0001>
module attributes {stable_mosaic.version = 11 : i64} {
  func.func @fused_gcn_kernel(%arg0: i32, %arg1: i32, %arg2: memref<128x128xbf16, #tpu.memory_space<vmem>>, %arg3: memref<128x128xbf16, #tpu.memory_space<vmem>>, %arg4: memref<1x128x128xbf16, #tpu.memory_space<vmem>>, %arg5: memref<1x1x128xf32, #tpu.memory_space<vmem>>, %arg6: memref<128x128xf32, #tpu.memory_space<vmem>>, %arg7: memref<128x128xf32, #tpu.memory_space<vmem>>, %arg8: memref<128x128xbf16, #tpu.memory_space<vmem>>) attributes {dimension_semantics = [#tpu.dimension_semantics<arbitrary>, #tpu.dimension_semantics<arbitrary>], iteration_bounds = array<i64: 3, 1>, scalar_prefetch = 0 : i64, scratch_operands = 2 : i64, tpu.core_type = #tpu.core_type<tc>, window_params = [{transform_indices = @transform_0, window_bounds = array<i64: 128, 128>}, {pipeline_mode = #tpu.pipeline_mode<synchronous>, transform_indices = @transform_1, window_bounds = array<i64: 128, 128>}, {transform_indices = @transform_2, window_bounds = array<i64: 1, 128, 128>}, {transform_indices = @transform_3, window_bounds = array<i64: 1, 1, 128>}, {transform_indices = @transform_4, window_bounds = array<i64: 128, 128>}]} {
    %c0_i32 = arith.constant 0 : i32
    %0 = arith.cmpi eq, %arg0, %c0_i32 : i32
    %c0_i32_0 = arith.constant 0 : i32
    %1 = arith.cmpi eq, %arg1, %c0_i32_0 : i32
    %2 = arith.andi %0, %1 : i1
    %3 = arith.extui %2 : i1 to i32
    %c0_i32_1 = arith.constant 0 : i32
    %4 = arith.cmpi ne, %3, %c0_i32_1 : i32
    scf.if %4 {
      %c0_14 = arith.constant 0 : index
      %c0_15 = arith.constant 0 : index
      %17 = vector.load %arg3[%c0_14, %c0_15] : memref<128x128xbf16, #tpu.memory_space<vmem>>, vector<128x128xbf16>
      %18 = arith.extf %17 : vector<128x128xbf16> to vector<128x128xf32>
      %c0_16 = arith.constant 0 : index
      %c0_17 = arith.constant 0 : index
      %19 = vector.load %arg7[%c0_16, %c0_17] : memref<128x128xf32, #tpu.memory_space<vmem>>, vector<128x128xf32>
      tpu.vector_store %arg7[%c0_16, %c0_17], %18 {strides = array<i32>} : memref<128x128xf32, #tpu.memory_space<vmem>>, vector<128x128xf32>,
    } else {
    }
    %c0_i32_2 = arith.constant 0 : i32
    %5 = arith.cmpi eq, %arg1, %c0_i32_2 : i32
    %6 = arith.extui %5 : i1 to i32
    %c0_i32_3 = arith.constant 0 : i32
    %7 = arith.cmpi ne, %6, %c0_i32_3 : i32
    scf.if %7 {
      %c0_14 = arith.constant 0 : index
      %c0_15 = arith.constant 0 : index
      %17 = vector.load %arg7[%c0_14, %c0_15] : memref<128x128xf32, #tpu.memory_space<vmem>>, vector<128x128xf32>
      %18 = arith.truncf %17 : vector<128x128xf32> to vector<128x128xbf16>
      %c0_16 = arith.constant 0 : index
      %c0_17 = arith.constant 0 : index
      %c0_18 = arith.constant 0 : index
      %19 = vector.load %arg4[%c0_16, %c0_17, %c0_18] : memref<1x128x128xbf16, #tpu.memory_space<vmem>>, vector<1x128x128xbf16>
      %20 = vector.shape_cast %19 : vector<1x128x128xbf16> to vector<128x128xbf16>
      %cst_19 = arith.constant dense<0.000000e+00> : vector<128x128xf32>
      %21 = tpu.matmul %18, %20, %cst_19 {dimension_numbers = #tpu.dot_dimension_numbers<[1], [0], [0], [1], [0, 0, 1, 1], [], []>} : vector<128x128xbf16>, vector<128x128xbf16>, vector<128x128xf32> -> vector<128x128xf32>
      %22 = arith.truncf %21 : vector<128x128xf32> to vector<128x128xbf16>
      %c0_20 = arith.constant 0 : index
      %c0_21 = arith.constant 0 : index
      %23 = vector.load %arg8[%c0_20, %c0_21] : memref<128x128xbf16, #tpu.memory_space<vmem>>, vector<128x128xbf16>
      tpu.vector_store %arg8[%c0_20, %c0_21], %22 {strides = array<i32>} : memref<128x128xbf16, #tpu.memory_space<vmem>>, vector<128x128xbf16>,
    } else {
    }
    %c0 = arith.constant 0 : index
    %c0_4 = arith.constant 0 : index
    %8 = vector.load %arg2[%c0, %c0_4] : memref<128x128xbf16, #tpu.memory_space<vmem>>, vector<128x128xbf16>
    %c0_5 = arith.constant 0 : index
    %c0_6 = arith.constant 0 : index
    %9 = vector.load %arg8[%c0_5, %c0_6] : memref<128x128xbf16, #tpu.memory_space<vmem>>, vector<128x128xbf16>
    %cst = arith.constant dense<0.000000e+00> : vector<128x128xf32>
    %10 = tpu.matmul %8, %9, %cst {dimension_numbers = #tpu.dot_dimension_numbers<[1], [0], [0], [1], [0, 0, 1, 1], [], []>} : vector<128x128xbf16>, vector<128x128xbf16>, vector<128x128xf32> -> vector<128x128xf32>
    %c0_7 = arith.constant 0 : index
    %c0_8 = arith.constant 0 : index
    %c0_9 = arith.constant 0 : index
    %11 = vector.load %arg5[%c0_7, %c0_8, %c0_9] : memref<1x1x128xf32, #tpu.memory_space<vmem>>, vector<1x1x128xf32>
    %12 = vector.shape_cast %11 : vector<1x1x128xf32> to vector<1x128xf32>
    %13 = vector.broadcast %12 : vector<1x128xf32> to vector<128x128xf32>
    %14 = arith.addf %10, %13 : vector<128x128xf32>
    %c0_10 = arith.constant 0 : index
    %c0_11 = arith.constant 0 : index
    %15 = vector.load %arg7[%c0_10, %c0_11] : memref<128x128xf32, #tpu.memory_space<vmem>>, vector<128x128xf32>
    tpu.vector_store %arg7[%c0_10, %c0_11], %14 {strides = array<i32>} : memref<128x128xf32, #tpu.memory_space<vmem>>, vector<128x128xf32>,
    %c0_12 = arith.constant 0 : index
    %c0_13 = arith.constant 0 : index
    %16 = vector.load %arg6[%c0_12, %c0_13] : memref<128x128xf32, #tpu.memory_space<vmem>>, vector<128x128xf32>
    tpu.vector_store %arg6[%c0_12, %c0_13], %14 {strides = array<i32>} : memref<128x128xf32, #tpu.memory_space<vmem>>, vector<128x128xf32>,
    return
  }
  func.func @transform_0(%arg0: i32, %arg1: i32) -> (i32, i32) {
    %c0_i32 = arith.constant 0 : i32
    %c0_i32_0 = arith.constant 0 : i32
    return %arg1, %c0_i32 : i32, i32
  }
  func.func @transform_1(%arg0: i32, %arg1: i32) -> (i32, i32) {
    %c0_i32 = arith.constant 0 : i32
    %c0_i32_0 = arith.constant 0 : i32
    %c0_i32_1 = arith.constant 0 : i32
    return %c0_i32, %c0_i32_0 : i32, i32
  }
  func.func @transform_2(%arg0: i32, %arg1: i32) -> (i32, i32, i32) {
    %c0_i32 = arith.constant 0 : i32
    %c0_i32_0 = arith.constant 0 : i32
    %c0_i32_1 = arith.constant 0 : i32
    return %arg0, %c0_i32, %c0_i32_0 : i32, i32, i32
  }
  func.func @transform_3(%arg0: i32, %arg1: i32) -> (i32, i32, i32) {
    %c0_i32 = arith.constant 0 : i32
    %c0_i32_0 = arith.constant 0 : i32
    %c0_i32_1 = arith.constant 0 : i32
    return %arg0, %c0_i32, %c0_i32_0 : i32, i32, i32
  }
  func.func @transform_4(%arg0: i32, %arg1: i32) -> (i32, i32) {
    %c0_i32 = arith.constant 0 : i32
    %c0_i32_0 = arith.constant 0 : i32
    return %arg1, %c0_i32 : i32, i32
  }
}

</mosaic_0001>

<llo_original>
// kernel: tpu_custom_call.1
$region0: #{tpu_custom_call.1}
  #allocation0 [shape = 'u32[]', space=smem, size = 0x4, offset = 0x4, fixed_abs, tag = 'smem constant byte address 0x4 - core index']
  #allocation1 [shape = 'u32[144,128]{1,0:T(1,128)}', space=vmem, size = 0x12000, scoped, tag = 'internal scratch']
  #allocation2 [shape = 'f32[128,128]{1,0:T(8,128)}', space=vmem, size = 0x10000, scoped, tag = 'scratch operand']
  #allocation3 [shape = 'bf16[128,128]{1,0:T(16,128)(2,1)}', space=vmem, size = 0x8000, scoped, tag = 'scratch operand']
  %s0 = inlined_call_operand.hbm [shape: bf16[128,128], index: 0, kind: input, shape index: {}]
  %s1 = inlined_call_operand.hbm [shape: bf16[128,128], index: 1, kind: input, shape index: {}]
  %s2 = inlined_call_operand.hbm [shape: bf16[3,128,128], index: 2, kind: input, shape index: {}]
  %s3 = inlined_call_operand.vmem [shape: f32[3,1,128], index: 3, kind: input, shape index: {}]
  %s4 = inlined_call_operand.hbm [shape: f32[128,128], index: 4, kind: output, shape index: {}]
  %s5 = sld [smem:[#allocation0]]
  $region69: #{tpu_custom_call.1} parent=0
    _
  %s7 = ssub.s32 1, %s5
  %s8 = scalar_select 0, %s7, %s5
  $region1: #{tpu_custom_call.1} parent=0
    #allocation4 [shape = 'u8[32768]{0}', space=vmem, size = 0x8000, scoped, tag = 'input window, operand 0, single buffered']
    #allocation5 [shape = 's32[2]{0}', space=sflag, size = 0x8, scoped, tag = 'scoped memory for tpu_custom_call.1']
    #allocation6 [shape = 's32[2]{0}', space=sflag, size = 0x8, scoped, tag = 'scoped memory for tpu_custom_call.1']
    #allocation7 [shape = 'u8[32768]{0}', space=vmem, size = 0x8000, scoped, tag = 'input window, operand 1, single buffered']
    #allocation8 [shape = 's32[1]{0}', space=sflag, size = 0x4, scoped, tag = 'scoped memory for tpu_custom_call.1']
    #allocation9 [shape = 'u8[65536]{0}', space=vmem, size = 0x10000, scoped, tag = 'input window, operand 2']
    #allocation10 [shape = 'u8[65536]{0}', space=vmem, size = 0x10000, scoped, tag = 'output window, operand 0, single buffered']
    %9 = vsyncpa [#allocation5], 0
    %10 = vsyncpa [#allocation8], 0
    %11 = vsyncpa [#allocation6], 0
    loop: start=0, step=1, limit=5
    $region2: #{tpu_custom_call.1} parent=1 // loop_pre_header
      _
    $region3: #{tpu_custom_call.1} parent=1 // loop_header
      %s13 = sphi 0, %s17
      %p14 = scmp.ge.s32.totalorder %s13, 5
      %s20 = sphi 0, %s32
      %s21 = sphi 0, %s28
      %s22 = sphi 0, %s20
      %s23 = sphi 0, %s21
      %s24 = sphi 0, %s22
      %s25 = sphi 0, %s23
      %s35 = sphi 0, %s37
      %s38 = sphi 0, %s35
      %s39 = sphi 0, %s38
      %s55 = sphi 0, %s39
      %s59 = sphi 0, %s59
      %s61 = sphi 0, %s59
      %s62 = sphi 0, %s61
      %s76 = sphi 0, %s62
      %s82 = sphi 0, %s84
      %s85 = sphi 0, %s82
      %s86 = sphi 0, %s85
      %s102 = sphi 0, %s86
      %s108 = sphi 0, %s110
      %s111 = sphi 0, %s108
      %s112 = sphi 0, %s111
      %s128 = sphi 0, %s112
      %s134 = sphi 0, %s136
      %s137 = sphi 0, %s134
      %s138 = sphi 0, %s137
      %s154 = sphi 0, %s138
    $region4: #{tpu_custom_call.1} parent=1 // loop_header_branch
      %16 = sbr.rel (%p14) target = $region8
    $region5: #{tpu_custom_call.1} parent=1 // loop_body
      %s18 = ssub.s32 %s13, 1
      %s19 = ssub.s32 %s13, 2
      %s26 = sadd.s32 1, %s21
      %p27 = scmp.ge.s32.totalorder %s26, 1
      %s28 = scalar_select %p27, 0, %s26
      %s29 = sadd.s32 1, %s20
      %s30 = scalar_select %p27, %s29, %s20
      %p31 = scmp.ge.s32.totalorder %s30, 3
      %s32 = scalar_select %p31, 0, %s30
      %s33 = ssub.s32 %s21, %s28
      %p34 = scmp.eq.s32.totalorder %s33, 0
      %s36 = sadd.s32 %s35, 1
      %s37 = scalar_select %p34, %s35, %s36
      %p40 = pneg %p34
      %p41 = scmp.eq.s32.totalorder %s13, 2
      %p42 = por %p40, %p41
      %p43 = scmp.ne.s32.totalorder %s35, %s38
      %p44 = scmp.eq.s32.totalorder %s13, 0
      %p45 = por %p43, %p44
      %p46 = scmp.ne.s32.totalorder %s35, %s38
      %p47 = scmp.eq.s32.totalorder %s18, 2
      %p48 = por %p46, %p47
      %p49 = scmp.ne.s32.totalorder %s38, %s39
      %p50 = scmp.eq.s32.totalorder %s18, 0
      %p51 = por %p49, %p50
      %p52 = scmp.ne.s32.totalorder %s38, %s39
      %p53 = scmp.eq.s32.totalorder %s19, 2
      %p54 = por %p52, %p53
      %p56 = scmp.ne.s32.totalorder %s39, %s55
      %p57 = scmp.eq.s32.totalorder %s19, 0
      %p58 = por %p56, %p57
      %s60 = sadd.s32 %s59, 1
      %p63 = scmp.eq.s32.totalorder %s13, 2
      %p64 = scmp.ne.s32.totalorder %s59, %s61
      %p65 = scmp.eq.s32.totalorder %s13, 0
      %p66 = por %p64, %p65
      %p67 = scmp.ne.s32.totalorder %s59, %s61
      %p68 = scmp.eq.s32.totalorder %s18, 2
      %p69 = por %p67, %p68
      %p70 = scmp.ne.s32.totalorder %s61, %s62
      %p71 = scmp.eq.s32.totalorder %s18, 0
      %p72 = por %p70, %p71
      %p73 = scmp.ne.s32.totalorder %s61, %s62
      %p74 = scmp.eq.s32.totalorder %s19, 2
      %p75 = por %p73, %p74
      %p77 = scmp.ne.s32.totalorder %s62, %s76
      %p78 = scmp.eq.s32.totalorder %s19, 0
      %p79 = por %p77, %p78
      %s80 = ssub.s32 %s20, %s32
      %p81 = scmp.eq.s32.totalorder %s80, 0
      %s83 = sadd.s32 %s82, 1
      %s84 = scalar_select %p81, %s82, %s83
      %p87 = pneg %p81
      %p88 = scmp.eq.s32.totalorder %s13, 2
      %p89 = por %p87, %p88
      %p90 = scmp.ne.s32.totalorder %s82, %s85
      %p91 = scmp.eq.s32.totalorder %s13, 0
      %p92 = por %p90, %p91
      %p93 = scmp.ne.s32.totalorder %s82, %s85
      %p94 = scmp.eq.s32.totalorder %s18, 2
      %p95 = por %p93, %p94
      %p96 = scmp.ne.s32.totalorder %s85, %s86
      %p97 = scmp.eq.s32.totalorder %s18, 0
      %p98 = por %p96, %p97
      %p99 = scmp.ne.s32.totalorder %s85, %s86
      %p100 = scmp.eq.s32.totalorder %s19, 2
      %p101 = por %p99, %p100
      %p103 = scmp.ne.s32.totalorder %s86, %s102
      %p104 = scmp.eq.s32.totalorder %s19, 0
      %p105 = por %p103, %p104
      %s106 = ssub.s32 %s20, %s32
      %p107 = scmp.eq.s32.totalorder %s106, 0
      %s109 = sadd.s32 %s108, 1
      %s110 = scalar_select %p107, %s108, %s109
      %p113 = pneg %p107
      %p114 = scmp.eq.s32.totalorder %s13, 2
      %p115 = por %p113, %p114
      %p116 = scmp.ne.s32.totalorder %s108, %s111
      %p117 = scmp.eq.s32.totalorder %s13, 0
      %p118 = por %p116, %p117
      %p119 = scmp.ne.s32.totalorder %s108, %s111
      %p120 = scmp.eq.s32.totalorder %s18, 2
      %p121 = por %p119, %p120
      %p122 = scmp.ne.s32.totalorder %s111, %s112
      %p123 = scmp.eq.s32.totalorder %s18, 0
      %p124 = por %p122, %p123
      %p125 = scmp.ne.s32.totalorder %s111, %s112
      %p126 = scmp.eq.s32.totalorder %s19, 2
      %p127 = por %p125, %p126
      %p129 = scmp.ne.s32.totalorder %s112, %s128
      %p130 = scmp.eq.s32.totalorder %s19, 0
      %p131 = por %p129, %p130
      %s132 = ssub.s32 %s21, %s28
      %p133 = scmp.eq.s32.totalorder %s132, 0
      %s135 = sadd.s32 %s134, 1
      %s136 = scalar_select %p133, %s134, %s135
      %p139 = pneg %p133
      %p140 = scmp.eq.s32.totalorder %s13, 2
      %p141 = por %p139, %p140
      %p142 = scmp.ne.s32.totalorder %s134, %s137
      %p143 = scmp.eq.s32.totalorder %s13, 0
      %p144 = por %p142, %p143
      %p145 = scmp.ne.s32.totalorder %s134, %s137
      %p146 = scmp.eq.s32.totalorder %s18, 2
      %p147 = por %p145, %p146
      %p148 = scmp.ne.s32.totalorder %s137, %s138
      %p149 = scmp.eq.s32.totalorder %s18, 0
      %p150 = por %p148, %p149
      %p151 = scmp.ne.s32.totalorder %s137, %s138
      %p152 = scmp.eq.s32.totalorder %s19, 2
      %p153 = por %p151, %p152
      %p155 = scmp.ne.s32.totalorder %s138, %s154
      %p156 = scmp.eq.s32.totalorder %s19, 0
      %p157 = por %p155, %p156
      %p158 = scmp.le.s32.totalorder 1, %s13
      %p159 = scmp.lt.s32.totalorder %s13, 4
      %p160 = pnand %p158, %p159
      %p161 = pneg %p160
      // Predicated region
      $region9: #{tpu_custom_call.1} parent=5 // pred_check
        _
      $region10: #{tpu_custom_call.1} parent=5 // pred_check_branch
        %163 = sbr.rel (%p160) target = $region12
      $region11: #{tpu_custom_call.1} parent=5 // pred_region
        %s164 = ssub.s32 %s13, 1
        // Predicated region
        $region13: #{tpu_custom_call.1} parent=11 // pred_check
          %p165 = pneg %p51
        $region14: #{tpu_custom_call.1} parent=11 // pred_check_branch
          %167 = sbr.rel (%p165) target = $region16
        $region15: #{tpu_custom_call.1} parent=11 // pred_region
          %s168 = smul.u32 16, %s23
          %s170 = ssub.s32 1024, 1024
          %171 = vsyncadd [#allocation5], %s170
          %s172 = smul.addr %s168, 64
          %s173 = scalar_lea.hbm %s0, %s172
          %s174 = sshll.u32 [#allocation4], 4
          %s175 = int_to_ptr.vmem [resolvable:$true] %s174
          %180 = dma.hbm_to_vmem [thread:$0]  %s173, 1024, %s175, [#allocation5], 64, 64, 4
        $region16: #{tpu_custom_call.1} parent=11 // pred_fallthru
          _
        // Predicated region
        $region17: #{tpu_custom_call.1} parent=11 // pred_check
          %p181 = pneg %p72
        $region18: #{tpu_custom_call.1} parent=11 // pred_check_branch
          %183 = sbr.rel (%p181) target = $region20
        $region19: #{tpu_custom_call.1} parent=11 // pred_region
          %s185 = ssub.s32 1024, 1024
          %186 = vsyncadd [#allocation8], %s185
          %s187 = sshll.u32 [#allocation7], 4
          %s188 = int_to_ptr.vmem [resolvable:$true] %s187
          %193 = dma.hbm_to_vmem [thread:$0]  %s1, 1024, %s188, [#allocation8], 64, 64, 4
        $region20: #{tpu_custom_call.1} parent=11 // pred_fallthru
          _
      $region12: #{tpu_custom_call.1} parent=5 // pred_fallthru
        _
      %p194 = scmp.lt.s32.totalorder %s13, 3
      // Predicated region
      $region21: #{tpu_custom_call.1} parent=5 // pred_check
        %p195 = pneg %p194
      $region22: #{tpu_custom_call.1} parent=5 // pred_check_branch
        %197 = sbr.rel (%p195) target = $region24
      $region23: #{tpu_custom_call.1} parent=5 // pred_region
        // Predicated region
        $region25: #{tpu_custom_call.1} parent=23 // pred_check
          %p198 = pneg %p92
        $region26: #{tpu_custom_call.1} parent=23 // pred_check_branch
          %200 = sbr.rel (%p198) target = $region28
        $region27: #{tpu_custom_call.1} parent=23 // pred_region
          %s201 = sand.u32 %s13, 1
          %s202 = scalar_lea.sflag [#allocation5], %s201
          %s203 = sand.u32 %s82, 1
          %s204 = smul.addr %s203, 64
          %s205 = scalar_lea.vmem [#allocation9], %s204
          %s207 = ssub.s32 1024, 1024
          %208 = vsyncadd %s202, %s207
          %s209 = smul.addr %s20, 16
          %s210 = smul.addr %s209, 64
          %s211 = scalar_lea.hbm %s2, %s210
          %s212 = sshll.u32 %s205, 4
          %s213 = int_to_ptr.vmem [resolvable:$true] %s212
          %218 = dma.hbm_to_vmem [thread:$0]  %s211, 1024, %s213, %s202, 64, 64, 4
        $region28: #{tpu_custom_call.1} parent=23 // pred_fallthru
          _
        // Predicated region
        $region29: #{tpu_custom_call.1} parent=23 // pred_check
          %p219 = pneg %p118
        $region30: #{tpu_custom_call.1} parent=23 // pred_check_branch
          %221 = sbr.rel (%p219) target = $region32
        $region31: #{tpu_custom_call.1} parent=23 // pred_region
          %p222 = scmp.lt.s32.totalorder %s20, 2
          %s223 = scalar_select %p222, %s20, 2
          %s224 = scalar_lea.vmem %s3, %s223
        $region32: #{tpu_custom_call.1} parent=23 // pred_fallthru
          _
      $region24: #{tpu_custom_call.1} parent=5 // pred_fallthru
        _
      %p225 = scmp.le.s32.totalorder 1, %s13
      %p226 = scmp.lt.s32.totalorder %s13, 4
      %p227 = pnand %p225, %p226
      %p228 = pneg %p227
      // Predicated region
      $region33: #{tpu_custom_call.1} parent=5 // pred_check
        _
      $region34: #{tpu_custom_call.1} parent=5 // pred_check_branch
        %230 = sbr.rel (%p227) target = $region36
      $region35: #{tpu_custom_call.1} parent=5 // pred_region
        %s231 = ssub.s32 %s13, 1
        // Predicated region
        $region37: #{tpu_custom_call.1} parent=35 // pred_check
          %p232 = pneg %p51
        $region38: #{tpu_custom_call.1} parent=35 // pred_check_branch
          %234 = sbr.rel (%p232) target = $region40
        $region39: #{tpu_custom_call.1} parent=35 // pred_region
          %235 = dma.done [#allocation5], 1024
        $region40: #{tpu_custom_call.1} parent=35 // pred_fallthru
          _
        // Predicated region
        $region41: #{tpu_custom_call.1} parent=35 // pred_check
          %p236 = pneg %p72
        $region42: #{tpu_custom_call.1} parent=35 // pred_check_branch
          %238 = sbr.rel (%p236) target = $region44
        $region43: #{tpu_custom_call.1} parent=35 // pred_region
          %239 = dma.done [#allocation8], 1024
        $region44: #{tpu_custom_call.1} parent=35 // pred_fallthru
          _
        %s240 = sand.u32 %s18, 1
        %s241 = scalar_lea.sflag [#allocation5], %s240
        %s242 = sand.u32 %s85, 1
        %s243 = smul.addr %s242, 64
        %s244 = scalar_lea.vmem [#allocation9], %s243
        // Predicated region
        $region45: #{tpu_custom_call.1} parent=35 // pred_check
          %p245 = pneg %p98
        $region46: #{tpu_custom_call.1} parent=35 // pred_check_branch
          %247 = sbr.rel (%p245) target = $region48
        $region47: #{tpu_custom_call.1} parent=35 // pred_region
          %248 = dma.done %s241, 1024
        $region48: #{tpu_custom_call.1} parent=35 // pred_fallthru
          _
        %p249 = pneg %p51
        %p250 = pneg %p48
        %p251 = pneg %p72
        %p252 = pneg %p69
        %s253 = sand.u32 %s18, 1
        %s254 = scalar_lea.sflag [#allocation5], %s253
        %s255 = sand.u32 %s85, 1
        %s256 = smul.addr %s255, 64
        %s257 = scalar_lea.vmem [#allocation9], %s256
        %p258 = pneg %p98
        %p259 = pneg %p95
        %p260 = scmp.lt.s32.totalorder %s22, 2
        %s261 = scalar_select %p260, %s22, 2
        %s262 = scalar_lea.vmem %s3, %s261
        %p263 = pneg %p124
        %p264 = pneg %p121
        %p265 = pneg %p150
        %p266 = pneg %p147
        %s267 = smul.u32 16, %s23
        %p268 = scmp.lt.s32.totalorder %s22, 2
        %s269 = scalar_select %p268, %s22, 2
        %s270 = scalar_lea.vmem %s3, %s269
        %s271 = smul.u32 16, %s23
        %p273 = scmp.eq.s32.totalorder %s22, 0
        %p274 = scmp.eq.s32.totalorder %s23, 0
        %p275 = pnand %p273, %p274
        %p276 = pneg %p275
        // Predicated region
        $region49: #{tpu_custom_call.1} parent=35 // pred_check
          _
        $region50: #{tpu_custom_call.1} parent=35 // pred_check_branch
          %278 = sbr.rel (%p275) target = $region52
        $region51: #{tpu_custom_call.1} parent=35 // pred_region
          %v279 = vld [vmem:[#allocation7] sm:$0xf]
          %v280 = vld [vmem:[#allocation7 + $0x4] sm:$0xf]
          %v281 = vld [vmem:[#allocation7 + $0x8] sm:$0xf]
          %v282 = vld [vmem:[#allocation7 + $0xc] sm:$0xf]
          %v283 = vld [vmem:[#allocation7 + $0x10] sm:$0xf]
          %v284 = vld [vmem:[#allocation7 + $0x14] sm:$0xf]
          %v285 = vld [vmem:[#allocation7 + $0x18] sm:$0xf]
          %v286 = vld [vmem:[#allocation7 + $0x1c] sm:$0xf]
          %v287 = vld [vmem:[#allocation7 + $0x20] sm:$0xf]
          %v288 = vld [vmem:[#allocation7 + $0x24] sm:$0xf]
          %v289 = vld [vmem:[#allocation7 + $0x28] sm:$0xf]
          %v290 = vld [vmem:[#allocation7 + $0x2c] sm:$0xf]
          %v291 = vld [vmem:[#allocation7 + $0x30] sm:$0xf]
          %v292 = vld [vmem:[#allocation7 + $0x34] sm:$0xf]
          %v293 = vld [vmem:[#allocation7 + $0x38] sm:$0xf]
          %v294 = vld [vmem:[#allocation7 + $0x3c] sm:$0xf]
          %v295 = vunpack.c.l.bf16 %v279
          %v296 = vunpack.c.l.bf16 %v280
          %v297 = vunpack.c.l.bf16 %v281
          %v298 = vunpack.c.l.bf16 %v282
          %v299 = vunpack.c.l.bf16 %v283
          %v300 = vunpack.c.l.bf16 %v284
          %v301 = vunpack.c.l.bf16 %v285
          %v302 = vunpack.c.l.bf16 %v286
          %v303 = vunpack.c.l.bf16 %v287
          %v304 = vunpack.c.l.bf16 %v288
          %v305 = vunpack.c.l.bf16 %v289
          %v306 = vunpack.c.l.bf16 %v290
          %v307 = vunpack.c.l.bf16 %v291
          %v308 = vunpack.c.l.bf16 %v292
          %v309 = vunpack.c.l.bf16 %v293
          %v310 = vunpack.c.l.bf16 %v294
          %311 = vst [vmem:[#allocation2] sm:$0xff] %v295
          %312 = vst [vmem:[#allocation2 + $0x8] sm:$0xff] %v296
          %313 = vst [vmem:[#allocation2 + $0x10] sm:$0xff] %v297
          %314 = vst [vmem:[#allocation2 + $0x18] sm:$0xff] %v298
          %315 = vst [vmem:[#allocation2 + $0x20] sm:$0xff] %v299
          %316 = vst [vmem:[#allocation2 + $0x28] sm:$0xff] %v300
          %317 = vst [vmem:[#allocation2 + $0x30] sm:$0xff] %v301
          %318 = vst [vmem:[#allocation2 + $0x38] sm:$0xff] %v302
          %319 = vst [vmem:[#allocation2 + $0x40] sm:$0xff] %v303
          %320 = vst [vmem:[#allocation2 + $0x48] sm:$0xff] %v304
          %321 = vst [vmem:[#allocation2 + $0x50] sm:$0xff] %v305
          %322 = vst [vmem:[#allocation2 + $0x58] sm:$0xff] %v306
          %323 = vst [vmem:[#allocation2 + $0x60] sm:$0xff] %v307
          %324 = vst [vmem:[#allocation2 + $0x68] sm:$0xff] %v308
          %325 = vst [vmem:[#allocation2 + $0x70] sm:$0xff] %v309
          %326 = vst [vmem:[#allocation2 + $0x78] sm:$0xff] %v310
        $region52: #{tpu_custom_call.1} parent=35 // pred_fallthru
          _
        // Predicated region
        $region53: #{tpu_custom_call.1} parent=35 // pred_check
          %p327 = pneg %p274
        $region54: #{tpu_custom_call.1} parent=35 // pred_check_branch
          %329 = sbr.rel (%p327) target = $region56
        $region55: #{tpu_custom_call.1} parent=35 // pred_region
          %v330 = vld [vmem:[#allocation2] sm:$0xff]
          %v331 = vld [vmem:[#allocation2 + $0x8] sm:$0xff]
          %v332 = vld [vmem:[#allocation2 + $0x10] sm:$0xff]
          %v333 = vld [vmem:[#allocation2 + $0x18] sm:$0xff]
          %v334 = vld [vmem:[#allocation2 + $0x20] sm:$0xff]
          %v335 = vld [vmem:[#allocation2 + $0x28] sm:$0xff]
          %v336 = vld [vmem:[#allocation2 + $0x30] sm:$0xff]
          %v337 = vld [vmem:[#allocation2 + $0x38] sm:$0xff]
          %v338 = vld [vmem:[#allocation2 + $0x40] sm:$0xff]
          %v339 = vld [vmem:[#allocation2 + $0x48] sm:$0xff]
          %v340 = vld [vmem:[#allocation2 + $0x50] sm:$0xff]
          %v341 = vld [vmem:[#allocation2 + $0x58] sm:$0xff]
          %v342 = vld [vmem:[#allocation2 + $0x60] sm:$0xff]
          %v343 = vld [vmem:[#allocation2 + $0x68] sm:$0xff]
          %v344 = vld [vmem:[#allocation2 + $0x70] sm:$0xff]
          %v345 = vld [vmem:[#allocation2 + $0x78] sm:$0xff]
          %v346 = vpack.c.bf16 %v331, %v330
          %v347 = vpack.c.bf16 %v333, %v332
          %v348 = vpack.c.bf16 %v335, %v334
          %v349 = vpack.c.bf16 %v337, %v336
          %v350 = vpack.c.bf16 %v339, %v338
          %v351 = vpack.c.bf16 %v341, %v340
          %v352 = vpack.c.bf16 %v343, %v342
          %v353 = vpack.c.bf16 %v345, %v344
          %v354 = vld [vmem:[%s244] sm:$0xf]
          %v355 = vld [vmem:[%s244 + $0x4] sm:$0xf]
          %v356 = vld [vmem:[%s244 + $0x8] sm:$0xf]
          %v357 = vld [vmem:[%s244 + $0xc] sm:$0xf]
          %v358 = vld [vmem:[%s244 + $0x10] sm:$0xf]
          %v359 = vld [vmem:[%s244 + $0x14] sm:$0xf]
          %v360 = vld [vmem:[%s244 + $0x18] sm:$0xf]
          %v361 = vld [vmem:[%s244 + $0x1c] sm:$0xf]
          %v362 = vld [vmem:[%s244 + $0x20] sm:$0xf]
          %v363 = vld [vmem:[%s244 + $0x24] sm:$0xf]
          %v364 = vld [vmem:[%s244 + $0x28] sm:$0xf]
          %v365 = vld [vmem:[%s244 + $0x2c] sm:$0xf]
          %v366 = vld [vmem:[%s244 + $0x30] sm:$0xf]
          %v367 = vld [vmem:[%s244 + $0x34] sm:$0xf]
          %v368 = vld [vmem:[%s244 + $0x38] sm:$0xf]
          %v369 = vld [vmem:[%s244 + $0x3c] sm:$0xf]
          %v386 = vunpack.c.l.b16 %v354
          %v387 = vunpack.c.l.b16 %v355
          %v388 = vunpack.c.l.b16 %v356
          %v389 = vunpack.c.l.b16 %v357
          %v390 = vunpack.c.l.b16 %v358
          %v391 = vunpack.c.l.b16 %v359
          %v392 = vunpack.c.l.b16 %v360
          %v393 = vunpack.c.l.b16 %v361
          %v394 = vunpack.c.l.b16 %v362
          %v395 = vunpack.c.l.b16 %v363
          %v396 = vunpack.c.l.b16 %v364
          %v397 = vunpack.c.l.b16 %v365
          %v398 = vunpack.c.l.b16 %v366
          %v399 = vunpack.c.l.b16 %v367
          %v400 = vunpack.c.l.b16 %v368
          %v401 = vunpack.c.l.b16 %v369
          %v402 = vpack.c.b16 %v387, %v386
          %v403 = vpack.c.b16 %v389, %v388
          %v404 = vpack.c.b16 %v391, %v390
          %v405 = vpack.c.b16 %v393, %v392
          %v406 = vpack.c.b16 %v395, %v394
          %v407 = vpack.c.b16 %v397, %v396
          %v408 = vpack.c.b16 %v399, %v398
          %v409 = vpack.c.b16 %v401, %v400
          %418 = vmatprep.subr.bf16.mxu0 0
          %419 = vmatpush1.bf16.msra.mxu0 %v402
          %420 = vmatprep.subr.bf16.mxu0 0
          %421 = vmatpush1.bf16.msra.mxu0 %v403
          %422 = vmatprep.subr.bf16.mxu0 0
          %423 = vmatpush1.bf16.msra.mxu0 %v404
          %424 = vmatprep.subr.bf16.mxu0 0
          %425 = vmatpush1.bf16.msra.mxu0 %v405
          %426 = vmatprep.subr.bf16.mxu0 0
          %427 = vmatpush1.bf16.msra.mxu0 %v406
          %428 = vmatprep.subr.bf16.mxu0 0
          %429 = vmatpush1.bf16.msra.mxu0 %v407
          %430 = vmatprep.subr.bf16.mxu0 0
          %431 = vmatpush1.bf16.msra.mxu0 %v408
          %432 = vmatprep.subr.bf16.mxu0 0
          %433 = vmatpush1.bf16.msra.mxu0 %v409
          %434 = vmatprep.subr.bf16.mxu0 0
          %435 = vmatpush1.bf16.msra.mxu0 0
          %436 = vmatprep.subr.bf16.mxu0 0
          %437 = vmatpush1.bf16.msra.mxu0 0
          %438 = vmatprep.subr.bf16.mxu0 0
          %439 = vmatpush1.bf16.msra.mxu0 0
          %440 = vmatprep.subr.bf16.mxu0 0
          %441 = vmatpush1.bf16.msra.mxu0 0
          %442 = vmatprep.subr.bf16.mxu0 0
          %443 = vmatpush1.bf16.msra.mxu0 0
          %444 = vmatprep.subr.bf16.mxu0 0
          %445 = vmatpush1.bf16.msra.mxu0 0
          %446 = vmatprep.subr.bf16.mxu0 0
          %447 = vmatpush1.bf16.msra.mxu0 0
          %448 = vmatprep.subr.bf16.mxu0 0
          %449 = vmatpush1.bf16.msra.mxu0 0
          %450 = vmatprep.mubr.bf16.mxu0 0
          %451 = vmatmul.mubr.bf16.gmra.mrb[0].mxu0 %v346
          %v452 = vpop.f32.mrb[0].mxu0
          %v453 = vadd.f32 0.0, %v452
          %v454 = vpop.f32.mrb[0].mxu0
          %v455 = vpop.f32.mrb[0].mxu0
          %v456 = vadd.f32 0.0, %v455
          %v457 = vpop.f32.mrb[0].mxu0
          %458 = vmatprep.mubr.bf16.mxu0 0
          %459 = vmatmul.mubr.bf16.gmra.mrb[0].mxu0 %v347
          %v460 = vpop.f32.mrb[0].mxu0
          %v461 = vadd.f32 0.0, %v460
          %v462 = vpop.f32.mrb[0].mxu0
          %v463 = vpop.f32.mrb[0].mxu0
          %v464 = vadd.f32 0.0, %v463
          %v465 = vpop.f32.mrb[0].mxu0
          %466 = vmatprep.mubr.bf16.mxu0 0
          %467 = vmatmul.mubr.bf16.gmra.mrb[0].mxu0 %v348
          %v468 = vpop.f32.mrb[0].mxu0
          %v469 = vadd.f32 0.0, %v468
          %v470 = vpop.f32.mrb[0].mxu0
          %v471 = vpop.f32.mrb[0].mxu0
          %v472 = vadd.f32 0.0, %v471
          %v473 = vpop.f32.mrb[0].mxu0
          %474 = vmatprep.mubr.bf16.mxu0 0
          %475 = vmatmul.mubr.bf16.gmra.mrb[0].mxu0 %v349
          %v476 = vpop.f32.mrb[0].mxu0
          %v477 = vadd.f32 0.0, %v476
          %v478 = vpop.f32.mrb[0].mxu0
          %v479 = vpop.f32.mrb[0].mxu0
          %v480 = vadd.f32 0.0, %v479
          %v481 = vpop.f32.mrb[0].mxu0
          %482 = vmatprep.mubr.bf16.mxu0 0
          %483 = vmatmul.mubr.bf16.gmra.mrb[0].mxu0 %v350
          %v484 = vpop.f32.mrb[0].mxu0
          %v485 = vadd.f32 0.0, %v484
          %v486 = vpop.f32.mrb[0].mxu0
          %v487 = vpop.f32.mrb[0].mxu0
          %v488 = vadd.f32 0.0, %v487
          %v489 = vpop.f32.mrb[0].mxu0
          %490 = vmatprep.mubr.bf16.mxu0 0
          %491 = vmatmul.mubr.bf16.gmra.mrb[0].mxu0 %v351
          %v492 = vpop.f32.mrb[0].mxu0
          %v493 = vadd.f32 0.0, %v492
          %v494 = vpop.f32.mrb[0].mxu0
          %v495 = vpop.f32.mrb[0].mxu0
          %v496 = vadd.f32 0.0, %v495
          %v497 = vpop.f32.mrb[0].mxu0
          %498 = vmatprep.mubr.bf16.mxu0 0
          %499 = vmatmul.mubr.bf16.gmra.mrb[0].mxu0 %v352
          %v500 = vpop.f32.mrb[0].mxu0
          %v501 = vadd.f32 0.0, %v500
          %v502 = vpop.f32.mrb[0].mxu0
          %v503 = vpop.f32.mrb[0].mxu0
          %v504 = vadd.f32 0.0, %v503
          %v505 = vpop.f32.mrb[0].mxu0
          %506 = vmatprep.mubr.bf16.mxu0 0
          %507 = vmatmul.mubr.bf16.gmra.mrb[0].mxu0 %v353
          %v508 = vpop.f32.mrb[0].mxu0
          %v509 = vadd.f32 0.0, %v508
          %v510 = vpop.f32.mrb[0].mxu0
          %v511 = vpop.f32.mrb[0].mxu0
          %v512 = vadd.f32 0.0, %v511
          %v513 = vpop.f32.mrb[0].mxu0
          %514 = vdwg.mxu0
          %v515 = vpack.c.bf16 %v456, %v453
          %v516 = vpack.c.bf16 %v464, %v461
          %v517 = vpack.c.bf16 %v472, %v469
          %v518 = vpack.c.bf16 %v480, %v477
          %v519 = vpack.c.bf16 %v488, %v485
          %v520 = vpack.c.bf16 %v496, %v493
          %v521 = vpack.c.bf16 %v504, %v501
          %v522 = vpack.c.bf16 %v512, %v509
          %523 = vst [vmem:[#allocation3] sm:$0xff] %v515
          %524 = vst [vmem:[#allocation3 + $0x8] sm:$0xff] %v516
          %525 = vst [vmem:[#allocation3 + $0x10] sm:$0xff] %v517
          %526 = vst [vmem:[#allocation3 + $0x18] sm:$0xff] %v518
          %527 = vst [vmem:[#allocation3 + $0x20] sm:$0xff] %v519
          %528 = vst [vmem:[#allocation3 + $0x28] sm:$0xff] %v520
          %529 = vst [vmem:[#allocation3 + $0x30] sm:$0xff] %v521
          %530 = vst [vmem:[#allocation3 + $0x38] sm:$0xff] %v522
        $region56: #{tpu_custom_call.1} parent=35 // pred_fallthru
          _
        %v531 = vld [vmem:[#allocation4] sm:$0xf]
        %v532 = vld [vmem:[#allocation4 + $0x4] sm:$0xf]
        %v533 = vld [vmem:[#allocation4 + $0x8] sm:$0xf]
        %v534 = vld [vmem:[#allocation4 + $0xc] sm:$0xf]
        %v535 = vld [vmem:[#allocation4 + $0x10] sm:$0xf]
        %v536 = vld [vmem:[#allocation4 + $0x14] sm:$0xf]
        %v537 = vld [vmem:[#allocation4 + $0x18] sm:$0xf]
        %v538 = vld [vmem:[#allocation4 + $0x1c] sm:$0xf]
        %v539 = vld [vmem:[#allocation4 + $0x20] sm:$0xf]
        %v540 = vld [vmem:[#allocation4 + $0x24] sm:$0xf]
        %v541 = vld [vmem:[#allocation4 + $0x28] sm:$0xf]
        %v542 = vld [vmem:[#allocation4 + $0x2c] sm:$0xf]
        %v543 = vld [vmem:[#allocation4 + $0x30] sm:$0xf]
        %v544 = vld [vmem:[#allocation4 + $0x34] sm:$0xf]
        %v545 = vld [vmem:[#allocation4 + $0x38] sm:$0xf]
        %v546 = vld [vmem:[#allocation4 + $0x3c] sm:$0xf]
        %v547 = vld [vmem:[#allocation3] sm:$0xff]
        %v548 = vld [vmem:[#allocation3 + $0x8] sm:$0xff]
        %v549 = vld [vmem:[#allocation3 + $0x10] sm:$0xff]
        %v550 = vld [vmem:[#allocation3 + $0x18] sm:$0xff]
        %v551 = vld [vmem:[#allocation3 + $0x20] sm:$0xff]
        %v552 = vld [vmem:[#allocation3 + $0x28] sm:$0xff]
        %v553 = vld [vmem:[#allocation3 + $0x30] sm:$0xff]
        %v554 = vld [vmem:[#allocation3 + $0x38] sm:$0xff]
        %v555 = vld [vmem:[%s270] sm:$0x1]
        %v557 = vlaneseq
        %v558 = vshrl.u32 %v557, 7
        %v559 = vsub.s32 0, %v558
        %v560 = vrot.slane %v555, %v559
        %v578 = vunpack.c.l.b16 %v531
        %v579 = vunpack.c.l.b16 %v532
        %v580 = vunpack.c.l.b16 %v533
        %v581 = vunpack.c.l.b16 %v534
        %v582 = vunpack.c.l.b16 %v535
        %v583 = vunpack.c.l.b16 %v536
        %v584 = vunpack.c.l.b16 %v537
        %v585 = vunpack.c.l.b16 %v538
        %v586 = vunpack.c.l.b16 %v539
        %v587 = vunpack.c.l.b16 %v540
        %v588 = vunpack.c.l.b16 %v541
        %v589 = vunpack.c.l.b16 %v542
        %v590 = vunpack.c.l.b16 %v543
        %v591 = vunpack.c.l.b16 %v544
        %v592 = vunpack.c.l.b16 %v545
        %v593 = vunpack.c.l.b16 %v546
        %v594 = vpack.c.b16 %v579, %v578
        %v595 = vpack.c.b16 %v581, %v580
        %v596 = vpack.c.b16 %v583, %v582
        %v597 = vpack.c.b16 %v585, %v584
        %v598 = vpack.c.b16 %v587, %v586
        %v599 = vpack.c.b16 %v589, %v588
        %v600 = vpack.c.b16 %v591, %v590
        %v601 = vpack.c.b16 %v593, %v592
        %610 = vmatprep.subr.bf16.mxu0 0
        %611 = vmatpush1.bf16.msra.mxu0 %v547
        %612 = vmatprep.subr.bf16.mxu0 0
        %613 = vmatpush1.bf16.msra.mxu0 %v548
        %614 = vmatprep.subr.bf16.mxu0 0
        %615 = vmatpush1.bf16.msra.mxu0 %v549
        %616 = vmatprep.subr.bf16.mxu0 0
        %617 = vmatpush1.bf16.msra.mxu0 %v550
        %618 = vmatprep.subr.bf16.mxu0 0
        %619 = vmatpush1.bf16.msra.mxu0 %v551
        %620 = vmatprep.subr.bf16.mxu0 0
        %621 = vmatpush1.bf16.msra.mxu0 %v552
        %622 = vmatprep.subr.bf16.mxu0 0
        %623 = vmatpush1.bf16.msra.mxu0 %v553
        %624 = vmatprep.subr.bf16.mxu0 0
        %625 = vmatpush1.bf16.msra.mxu0 %v554
        %626 = vmatprep.subr.bf16.mxu0 0
        %627 = vmatpush1.bf16.msra.mxu0 0
        %628 = vmatprep.subr.bf16.mxu0 0
        %629 = vmatpush1.bf16.msra.mxu0 0
        %630 = vmatprep.subr.bf16.mxu0 0
        %631 = vmatpush1.bf16.msra.mxu0 0
        %632 = vmatprep.subr.bf16.mxu0 0
        %633 = vmatpush1.bf16.msra.mxu0 0
        %634 = vmatprep.subr.bf16.mxu0 0
        %635 = vmatpush1.bf16.msra.mxu0 0
        %636 = vmatprep.subr.bf16.mxu0 0
        %637 = vmatpush1.bf16.msra.mxu0 0
        %638 = vmatprep.subr.bf16.mxu0 0
        %639 = vmatpush1.bf16.msra.mxu0 0
        %640 = vmatprep.subr.bf16.mxu0 0
        %641 = vmatpush1.bf16.msra.mxu0 0
        %642 = vmatprep.mubr.bf16.mxu0 0
        %643 = vmatmul.mubr.bf16.gmra.mrb[0].mxu0 %v594
        %v644 = vpop.f32.mrb[0].mxu0
        %v645 = vadd.f32 %v560, %v644
        %v646 = vpop.f32.mrb[0].mxu0
        %v647 = vpop.f32.mrb[0].mxu0
        %v648 = vadd.f32 %v560, %v647
        %v649 = vpop.f32.mrb[0].mxu0
        %650 = vmatprep.mubr.bf16.mxu0 0
        %651 = vmatmul.mubr.bf16.gmra.mrb[0].mxu0 %v595
        %v652 = vpop.f32.mrb[0].mxu0
        %v653 = vadd.f32 %v560, %v652
        %v654 = vpop.f32.mrb[0].mxu0
        %v655 = vpop.f32.mrb[0].mxu0
        %v656 = vadd.f32 %v560, %v655
        %v657 = vpop.f32.mrb[0].mxu0
        %658 = vmatprep.mubr.bf16.mxu0 0
        %659 = vmatmul.mubr.bf16.gmra.mrb[0].mxu0 %v596
        %v660 = vpop.f32.mrb[0].mxu0
        %v661 = vadd.f32 %v560, %v660
        %v662 = vpop.f32.mrb[0].mxu0
        %v663 = vpop.f32.mrb[0].mxu0
        %v664 = vadd.f32 %v560, %v663
        %v665 = vpop.f32.mrb[0].mxu0
        %666 = vmatprep.mubr.bf16.mxu0 0
        %667 = vmatmul.mubr.bf16.gmra.mrb[0].mxu0 %v597
        %v668 = vpop.f32.mrb[0].mxu0
        %v669 = vadd.f32 %v560, %v668
        %v670 = vpop.f32.mrb[0].mxu0
        %v671 = vpop.f32.mrb[0].mxu0
        %v672 = vadd.f32 %v560, %v671
        %v673 = vpop.f32.mrb[0].mxu0
        %674 = vmatprep.mubr.bf16.mxu0 0
        %675 = vmatmul.mubr.bf16.gmra.mrb[0].mxu0 %v598
        %v676 = vpop.f32.mrb[0].mxu0
        %v677 = vadd.f32 %v560, %v676
        %v678 = vpop.f32.mrb[0].mxu0
        %v679 = vpop.f32.mrb[0].mxu0
        %v680 = vadd.f32 %v560, %v679
        %v681 = vpop.f32.mrb[0].mxu0
        %682 = vmatprep.mubr.bf16.mxu0 0
        %683 = vmatmul.mubr.bf16.gmra.mrb[0].mxu0 %v599
        %v684 = vpop.f32.mrb[0].mxu0
        %v685 = vadd.f32 %v560, %v684
        %v686 = vpop.f32.mrb[0].mxu0
        %v687 = vpop.f32.mrb[0].mxu0
        %v688 = vadd.f32 %v560, %v687
        %v689 = vpop.f32.mrb[0].mxu0
        %690 = vmatprep.mubr.bf16.mxu0 0
        %691 = vmatmul.mubr.bf16.gmra.mrb[0].mxu0 %v600
        %v692 = vpop.f32.mrb[0].mxu0
        %v693 = vadd.f32 %v560, %v692
        %v694 = vpop.f32.mrb[0].mxu0
        %v695 = vpop.f32.mrb[0].mxu0
        %v696 = vadd.f32 %v560, %v695
        %v697 = vpop.f32.mrb[0].mxu0
        %698 = vmatprep.mubr.bf16.mxu0 0
        %699 = vmatmul.mubr.bf16.gmra.mrb[0].mxu0 %v601
        %v700 = vpop.f32.mrb[0].mxu0
        %v701 = vadd.f32 %v560, %v700
        %v702 = vpop.f32.mrb[0].mxu0
        %v703 = vpop.f32.mrb[0].mxu0
        %v704 = vadd.f32 %v560, %v703
        %v705 = vpop.f32.mrb[0].mxu0
        %706 = vdwg.mxu0
        %707 = vst [vmem:[#allocation2] sm:$0xff] %v645
        %708 = vst [vmem:[#allocation2 + $0x8] sm:$0xff] %v648
        %709 = vst [vmem:[#allocation2 + $0x10] sm:$0xff] %v653
        %710 = vst [vmem:[#allocation2 + $0x18] sm:$0xff] %v656
        %711 = vst [vmem:[#allocation2 + $0x20] sm:$0xff] %v661
        %712 = vst [vmem:[#allocation2 + $0x28] sm:$0xff] %v664
        %713 = vst [vmem:[#allocation2 + $0x30] sm:$0xff] %v669
        %714 = vst [vmem:[#allocation2 + $0x38] sm:$0xff] %v672
        %715 = vst [vmem:[#allocation2 + $0x40] sm:$0xff] %v677
        %716 = vst [vmem:[#allocation2 + $0x48] sm:$0xff] %v680
        %717 = vst [vmem:[#allocation2 + $0x50] sm:$0xff] %v685
        %718 = vst [vmem:[#allocation2 + $0x58] sm:$0xff] %v688
        %719 = vst [vmem:[#allocation2 + $0x60] sm:$0xff] %v693
        %720 = vst [vmem:[#allocation2 + $0x68] sm:$0xff] %v696
        %721 = vst [vmem:[#allocation2 + $0x70] sm:$0xff] %v701
        %722 = vst [vmem:[#allocation2 + $0x78] sm:$0xff] %v704
        %723 = vst [vmem:[#allocation10] sm:$0xff] %v645
        %724 = vst [vmem:[#allocation10 + $0x8] sm:$0xff] %v648
        %725 = vst [vmem:[#allocation10 + $0x10] sm:$0xff] %v653
        %726 = vst [vmem:[#allocation10 + $0x18] sm:$0xff] %v656
        %727 = vst [vmem:[#allocation10 + $0x20] sm:$0xff] %v661
        %728 = vst [vmem:[#allocation10 + $0x28] sm:$0xff] %v664
        %729 = vst [vmem:[#allocation10 + $0x30] sm:$0xff] %v669
        %730 = vst [vmem:[#allocation10 + $0x38] sm:$0xff] %v672
        %731 = vst [vmem:[#allocation10 + $0x40] sm:$0xff] %v677
        %732 = vst [vmem:[#allocation10 + $0x48] sm:$0xff] %v680
        %733 = vst [vmem:[#allocation10 + $0x50] sm:$0xff] %v685
        %734 = vst [vmem:[#allocation10 + $0x58] sm:$0xff] %v688
        %735 = vst [vmem:[#allocation10 + $0x60] sm:$0xff] %v693
        %736 = vst [vmem:[#allocation10 + $0x68] sm:$0xff] %v696
        %737 = vst [vmem:[#allocation10 + $0x70] sm:$0xff] %v701
        %738 = vst [vmem:[#allocation10 + $0x78] sm:$0xff] %v704
        // Predicated region
        $region57: #{tpu_custom_call.1} parent=35 // pred_check
          %p739 = pneg %p147
        $region58: #{tpu_custom_call.1} parent=35 // pred_check_branch
          %741 = sbr.rel (%p739) target = $region60
        $region59: #{tpu_custom_call.1} parent=35 // pred_region
          %s742 = smul.u32 16, %s23
          %s744 = ssub.s32 2048, 2048
          %745 = vsyncadd [#allocation6], %s744
          %s746 = smul.addr %s742, 128
          %s747 = scalar_lea.hbm %s4, %s746
          %s748 = sshll.u32 [#allocation10], 4
          %s749 = int_to_ptr.vmem [resolvable:$true] %s748
          %754 = dma.vmem_to_hbm [thread:$0]  %s749, 2048, %s747, [#allocation6], 128, 128, 8
        $region60: #{tpu_custom_call.1} parent=35 // pred_fallthru
          _
        // Predicated region
        $region61: #{tpu_custom_call.1} parent=35 // pred_check
          %p755 = pneg %p147
        $region62: #{tpu_custom_call.1} parent=35 // pred_check_branch
          %757 = sbr.rel (%p755) target = $region64
        $region63: #{tpu_custom_call.1} parent=35 // pred_region
          %758 = dma.done [#allocation6], 2048
        $region64: #{tpu_custom_call.1} parent=35 // pred_fallthru
          _
      $region36: #{tpu_custom_call.1} parent=5 // pred_fallthru
        _
      %p759 = scmp.le.s32.totalorder 2, %s13
      // Predicated region
      $region65: #{tpu_custom_call.1} parent=5 // pred_check
        %p760 = pneg %p759
      $region66: #{tpu_custom_call.1} parent=5 // pred_check_branch
        %762 = sbr.rel (%p760) target = $region68
      $region67: #{tpu_custom_call.1} parent=5 // pred_region
        %s763 = ssub.s32 %s13, 2
      $region68: #{tpu_custom_call.1} parent=5 // pred_fallthru
        _
    $region6: #{tpu_custom_call.1} parent=1 // loop_footer
      %s17 = sadd.s32 1, %s13
    $region7: #{tpu_custom_call.1} parent=1 // loop_footer_branch
      %12 = sbr.rel target = $region3
    $region8: #{tpu_custom_call.1} parent=1 // loop_exit
      _
    %764 = vsyncpa [#allocation5], 1
    %s765 = scalar_lea.sflag [#allocation5], 1
    %766 = vsyncpa %s765, 1
    %767 = vsyncpa [#allocation8], 1
    %768 = vsyncpa [#allocation6], 1
    %s769 = scalar_lea.sflag [#allocation6], 1
    %770 = vsyncpa %s769, 1

</llo_original>
